<compile_context>
chip_gen: v6e
topology: v6e:2x2x1
jax: 0.10.0
libtpu: 0.0.40
codegen_flags: <defaults>
</compile_context>

<pallas_src>
import functools
import itertools
import math

import jax
import jax.numpy as jnp
import numpy as np
from jax.experimental import pallas as pl
from jax.experimental.pallas import tpu as pltpu

DTYPE = jnp.bfloat16          # activation dtype on the glue path


def _round_up(x, m):
    return (x + m - 1) // m * m


# --------------------------------------------------------------------------
# Per-generation budgets (v5e/v6e: 128 MiB VMEM -> big tiles; v7x: 64 MiB)
# --------------------------------------------------------------------------
def _detect_vmem_bytes():
    try:
        return int(pltpu.get_tpu_info().vmem_capacity_bytes)
    except Exception:
        return 64 * 1024 * 1024        # unknown -> assume the small-VMEM chip


_PHYS_VMEM = _detect_vmem_bytes()
_BIG_VMEM = _PHYS_VMEM >= 100 * 1024 * 1024
_VMEM_LIMIT = (96 if _BIG_VMEM else 32) * 1024 * 1024
_A_TILE_BYTES = (8 if _BIG_VMEM else 2) * 1024 * 1024   # bf16 A tile (tm*tk*2)


# --------------------------------------------------------------------------
# Pallas kernel: tiled matmul (bf16 operands, f32 acc) + fused bias/LeakyReLU
# --------------------------------------------------------------------------
def _mm_kernel(a_ref, b_ref, bias_ref, o_ref, acc_ref, *, act):
    @pl.when(pl.program_id(2) == 0)
    def _():
        acc_ref[...] = jnp.zeros_like(acc_ref)

    acc_ref[...] += jnp.dot(a_ref[...], b_ref[...],
                            preferred_element_type=jnp.float32)

    @pl.when(pl.program_id(2) == pl.num_programs(2) - 1)
    def _():
        y = acc_ref[...] + bias_ref[...]          # f32 epilogue
        if act == "lrelu":
            y = jnp.where(y >= 0, y, 0.2 * y)
        o_ref[...] = y.astype(o_ref.dtype)


def _select_tiles(Mp, Np, Kp):
    tk = Kp if Kp < 128 else max(t for t in (2048, 1024, 512, 256, 128)
                                 if Kp % t == 0)
    tn = Np if Np < 128 else max(t for t in (512, 256, 128) if Np % t == 0)
    if Mp < 128:
        tm = Mp
    else:
        tm = 128
        for cand in (2048, 1024, 512, 256):
            if Mp % cand == 0 and cand * tk * 2 <= _A_TILE_BYTES:
                tm = cand
                break
    # keep both v7x TensorCores busy / improve pipelining when it is free
    if (Mp // tm) * (Np // tn) < 2:
        if tn > 128 and Np % (tn // 2) == 0:
            tn //= 2
        elif tm >= 256:
            tm //= 2
    return tm, tn, tk


def matmul_bias_act(a, w, bias, act=None, out_dtype=DTYPE):
    """act(a @ w + bias); a:[M,K], w:[K,N], bias:[N]. bf16 in, f32 accumulate."""
    M, K = a.shape
    K2, N = w.shape
    assert K == K2 and bias.shape == (N,)

    a = a.astype(jnp.bfloat16)
    w = w.astype(jnp.bfloat16)
    bias = bias.astype(jnp.float32)

    # K / N below 128 are kept full-width (no pad copy, no depad slice)
    if K >= 128:
        Kp = _round_up(K, 128)
        if Kp != K:
            a = jnp.pad(a, ((0, 0), (0, Kp - K)))
            w = jnp.pad(w, ((0, Kp - K), (0, 0)))
    else:
        Kp = K
    if N >= 128:
        Np = _round_up(N, 128)
        if Np != N:
            w = jnp.pad(w, ((0, 0), (0, Np - N)))
            bias = jnp.pad(bias, (0, Np - N))
    else:
        Np = N
    Mp = _round_up(M, 128) if M >= 128 else _round_up(M, 8)
    if Mp != M:
        a = jnp.pad(a, ((0, Mp - M), (0, 0)))

    tm, tn, tk = _select_tiles(Mp, Np, Kp)
    grid = (Mp // tm, Np // tn, Kp // tk)

    flops = 2 * Mp * Kp * Np
    bytes_accessed = ((Mp * Kp + Kp * Np) * 2
                      + Mp * Np * jnp.dtype(out_dtype).itemsize + Np * 4)

    out = pl.pallas_call(
        functools.partial(_mm_kernel, act=act),
        out_shape=jax.ShapeDtypeStruct((Mp, Np), out_dtype),
        grid=grid,
        in_specs=[
            pl.BlockSpec((tm, tk), lambda i, j, k: (i, k)),
            pl.BlockSpec((tk, tn), lambda i, j, k: (k, j)),
            pl.BlockSpec((1, tn), lambda i, j, k: (0, j)),
        ],
        out_specs=pl.BlockSpec((tm, tn), lambda i, j, k: (i, j)),
        scratch_shapes=[pltpu.VMEM((tm, tn), jnp.float32)],
        compiler_params=pltpu.CompilerParams(
            dimension_semantics=("parallel", "parallel", "arbitrary"),
            vmem_limit_bytes=_VMEM_LIMIT),
        cost_estimate=pl.CostEstimate(flops=flops, transcendentals=0,
                                      bytes_accessed=bytes_accessed),
    )(a, w, bias.reshape(1, Np))
    if Mp != M or Np != N:
        out = out[:M, :N]
    return out


# --------------------------------------------------------------------------
# Pallas kernel: implicit-GEMM 3x3(x3) conv, stride 1, pad 1 (no im2col).
# x stays in HBM; the whole padded per-batch volume is DMA'd to VMEM once and
# re-used across Cout tiles and taps.  Taps (kd,kh) live on the grid's
# reduction axis; the 3 minor (kw) taps are unrolled with static halo slices.
# --------------------------------------------------------------------------
def _conv3_kernel(x_hbm, w_ref, b_ref, o_ref, x_vmem, sem, acc_ref, *,
                  nd, k, spatial, act, cast_f32):
    bb = pl.program_id(0)
    j = pl.program_id(1)
    t = pl.program_id(2)

    @pl.when(jnp.logical_and(j == 0, t == 0))
    def _():
        cp = pltpu.make_async_copy(x_hbm.at[bb], x_vmem, sem.at[0])
        cp.start()
        cp.wait()

    @pl.when(t == 0)
    def _():
        acc_ref[...] = jnp.zeros_like(acc_ref)

    if nd == 3:
        D, H, W = spatial
        kd = t // k
        kh = t % k
    else:
        H, W = spatial
        kh = t

    S = acc_ref.shape[0]
    for kw in range(k):                                  # static unroll
        if nd == 3:
            a = x_vmem[pl.ds(kd, D), pl.ds(kh, H), pl.ds(kw, W), :]
        else:
            a = x_vmem[pl.ds(kh, H), pl.ds(kw, W), :]
        wv = w_ref[kw]
        if cast_f32:                                     # W%16!=0: reshape in f32
            a = a.astype(jnp.float32)
            wv = wv.astype(jnp.float32)
        a = a.reshape(S, a.shape[-1])
        acc_ref[...] += jnp.dot(a, wv, preferred_element_type=jnp.float32)

    @pl.when(t == pl.num_programs(2) - 1)
    def _():
        y = acc_ref[...] + b_ref[...]
        if act == "lrelu":
            y = jnp.where(y >= 0, y, 0.2 * y)
        o_ref[...] = y.astype(o_ref.dtype)


def _conv3_implicit(x, w, b, *, act):
    B, Cin = x.shape[0], x.shape[-1]
    spatial = tuple(int(s) for s in x.shape[1:-1])
    nd = len(spatial)
    cout = w.shape[0]
    k = 3
    S = int(np.prod(spatial))
    Wsp = spatial[-1]
    cast_f32 = (Wsp % 16 != 0)      # bf16 packed sublane tile is 16

    x_pad = jnp.pad(x.astype(jnp.bfloat16),
                    ((0, 0),) + ((1, 1),) * nd + ((0, 0),))
    # weight -> (k^(nd-1), k, Cin, Cout), taps row-major over leading kernel dims
    w_t = jnp.transpose(w, tuple(range(2, 2 + nd)) + (1, 0))
    w_t = w_t.reshape((k ** (nd - 1), k, Cin, cout)).astype(jnp.bfloat16)
    bias = b.astype(jnp.float32).reshape(1, cout)

    tn = cout if cout < 128 else (256 if cout % 256 == 0 else 128)
    n_tiles = cout // tn
    taps_outer = k ** (nd - 1)
    grid = (B, n_tiles, taps_outer)

    flops = 2 * B * S * (k ** nd) * Cin * cout
    bytes_accessed = (x_pad.size * 2 + B * w_t.size * 2 + B * S * cout * 2
                      + cout * 4)

    out = pl.pallas_call(
        functools.partial(_conv3_kernel, nd=nd, k=k, spatial=spatial,
                          act=act, cast_f32=cast_f32),
        out_shape=jax.ShapeDtypeStruct((B, S, cout), DTYPE),
        grid=grid,
        in_specs=[
            pl.BlockSpec(memory_space=pl.ANY),                       # x_pad (HBM)
            pl.BlockSpec((None, k, Cin, tn), lambda bb, j, t: (t, 0, 0, j)),
            pl.BlockSpec((1, tn), lambda bb, j, t: (0, j)),
        ],
        out_specs=pl.BlockSpec((None, S, tn), lambda bb, j, t: (bb, 0, j)),
        scratch_shapes=[
            pltpu.VMEM(x_pad.shape[1:], jnp.bfloat16),               # halo volume
            pltpu.SemaphoreType.DMA((1,)),
            pltpu.VMEM((S, tn), jnp.float32),                        # accumulator
        ],
        compiler_params=pltpu.CompilerParams(
            dimension_semantics=("parallel", "arbitrary", "arbitrary"),
            vmem_limit_bytes=_VMEM_LIMIT),
        cost_estimate=pl.CostEstimate(flops=flops, transcendentals=0,
                                      bytes_accessed=bytes_accessed),
    )(x_pad, w_t, bias)
    return out.reshape((B,) + spatial + (cout,))


# --------------------------------------------------------------------------
# Convolution wrapper.  1x1 -> plain GEMM; 3x3 -> implicit GEMM; tiny 4^3
# layer (W not a multiple of 8) -> materialized im2col fallback.
# --------------------------------------------------------------------------
def _im2col_cl(x, k, pad, nd):
    B, C = x.shape[0], x.shape[-1]
    spatial = x.shape[1:-1]
    xp = jnp.pad(x, ((0, 0),) + ((pad, pad),) * nd + ((0, 0),))
    cols = []
    for offs in itertools.product(range(k), repeat=nd):
        sl = (slice(None),) + tuple(
            slice(o, o + s) for o, s in zip(offs, spatial)) + (slice(None),)
        cols.append(xp[sl])
    patches = jnp.concatenate(cols, axis=-1)
    return patches.reshape(-1, len(cols) * C)


def equal_conv(x, w, b, *, pad=0, act=None):
    """Stride-1 conv; x channels-last [B, *spatial, Cin], w [Cout, Cin, *k]."""
    B, Cin = x.shape[0], x.shape[-1]
    spatial = x.shape[1:-1]
    nd = len(spatial)
    cout = w.shape[0]
    k = w.shape[2] if w.ndim > 2 else 1
    if k == 1:
        y = matmul_bias_act(x.reshape(-1, Cin), w.reshape(cout, Cin).T, b,
                            act=act)
        return y.reshape((B,) + spatial + (cout,))

    S = int(np.prod(spatial))
    implicit_ok = (k == 3 and pad == 1 and spatial[-1] % 8 == 0 and S % 8 == 0
                   and (cout < 128 or cout % 128 == 0))
    if implicit_ok:
        return _conv3_implicit(x, w, b, act=act)

    # TODO(synk): only the 4^3 first conv hits this materialized-im2col path.
    patches = _im2col_cl(x, k, pad, nd)
    wm = jnp.transpose(w, tuple(range(2, 2 + nd)) + (1, 0)).reshape(-1, cout)
    y = matmul_bias_act(patches, wm, b, act=act)
    return y.reshape((B,) + spatial + (cout,))


# --------------------------------------------------------------------------
# Pallas kernels: AdaIN (instance norm over spatial + style affine) + LeakyReLU
#  - C >= 128: channels tiled on lanes (block = (S, ct))
#  - C <  128: spatial folded into lanes (g = 128//C groups), per-channel
#              stats finished with a log-step pltpu.roll lane-group reduction.
# --------------------------------------------------------------------------
def _adain_kernel(x_ref, g_ref, b_ref, o_ref):
    x = x_ref[...].astype(jnp.float32)                        # (S, ct)
    mean = jnp.mean(x, axis=0, keepdims=True)
    cen = x - mean
    var = jnp.mean(cen * cen, axis=0, keepdims=True)          # biased (torch IN)
    y = g_ref[...] * (cen * jax.lax.rsqrt(var + 1e-5)) + b_ref[...]
    o_ref[...] = jnp.where(y >= 0, y, 0.2 * y).astype(o_ref.dtype)


def _adain_fold_kernel(x_ref, g_ref, b_ref, o_ref, *, groups, total_s):
    x = x_ref[...].astype(jnp.float32)                        # (Sg, 128)
    lanes = x.shape[1]
    cstep = lanes // groups
    inv_n = 1.0 / float(total_s)

    def group_sum(v):                    # cyclic all-reduce across lane groups
        sh = cstep
        while sh < lanes:
            v = v + pltpu.roll(v, shift=sh, axis=1)
            sh *= 2
        return v

    mean = group_sum(jnp.sum(x, axis=0, keepdims=True)) * inv_n
    cen = x - mean
    var = group_sum(jnp.sum(cen * cen, axis=0, keepdims=True)) * inv_n
    y = g_ref[...] * (cen * jax.lax.rsqrt(var + 1e-5)) + b_ref[...]
    o_ref[...] = jnp.where(y >= 0, y, 0.2 * y).astype(o_ref.dtype)


def adain_lrelu(x, gamma, beta):
    """x: [B, *spatial, C] (bf16); gamma/beta: [B, 1, C] (f32, precomputed)."""
    B, C = x.shape[0], x.shape[-1]
    S = int(np.prod(x.shape[1:-1]))
    xf = x.reshape(B, S, C)
    gamma = gamma.astype(jnp.float32).reshape(B, 1, C)
    beta = beta.astype(jnp.float32).reshape(B, 1, C)

    if C < 128 and 128 % C == 0 and S % (128 // C) == 0:
        g = 128 // C
        Sg = S // g
        xg = xf.reshape(B, Sg, g * C)
        gg = jnp.tile(gamma, (1, 1, g))
        bg = jnp.tile(beta, (1, 1, g))
        out = pl.pallas_call(
            functools.partial(_adain_fold_kernel, groups=g, total_s=S),
            out_shape=jax.ShapeDtypeStruct((B, Sg, g * C), x.dtype),
            grid=(B,),
            in_specs=[
                pl.BlockSpec((None, Sg, g * C), lambda b: (b, 0, 0)),
                pl.BlockSpec((None, 1, g * C), lambda b: (b, 0, 0)),
                pl.BlockSpec((None, 1, g * C), lambda b: (b, 0, 0)),
            ],
            out_specs=pl.BlockSpec((None, Sg, g * C), lambda b: (b, 0, 0)),
            compiler_params=pltpu.CompilerParams(
                dimension_semantics=("parallel",),
                vmem_limit_bytes=_VMEM_LIMIT),
        )(xg, gg, bg)
        return out.reshape(x.shape)

    if C % 128 == 0:
        ct = 128
        budget = 4 * 1024 * 1024
        while C % (ct * 2) == 0 and (ct * 2) * S * xf.dtype.itemsize <= budget:
            ct *= 2
    else:
        ct = C
    out = pl.pallas_call(
        _adain_kernel,
        out_shape=jax.ShapeDtypeStruct((B, S, C), x.dtype),
        grid=(B, C // ct),
        in_specs=[
            pl.BlockSpec((None, S, ct), lambda b, c: (b, 0, c)),
            pl.BlockSpec((None, 1, ct), lambda b, c: (b, 0, c)),
            pl.BlockSpec((None, 1, ct), lambda b, c: (b, 0, c)),
        ],
        out_specs=pl.BlockSpec((None, S, ct), lambda b, c: (b, 0, c)),
        compiler_params=pltpu.CompilerParams(
            dimension_semantics=("parallel", "parallel"),
            vmem_limit_bytes=_VMEM_LIMIT),
    )(xf, gamma, beta)
    return out.reshape(x.shape)


# --------------------------------------------------------------------------
# Pallas kernel: fused style MLP (PixelNorm + 8 x (EqualLinear + LeakyReLU))
# --------------------------------------------------------------------------
def _style_mlp_kernel(z_ref, w_ref, b_ref, o_ref):
    x = z_ref[...].astype(jnp.float32)                        # (Mp, D)
    x = x * jax.lax.rsqrt(jnp.mean(x * x, axis=-1, keepdims=True) + 1e-8)
    for l in range(w_ref.shape[0]):                           # static unroll
        y = jnp.dot(x, w_ref[l], preferred_element_type=jnp.float32) + b_ref[l]
        x = jnp.where(y >= 0, y, 0.2 * y)
    o_ref[...] = x


def style_mlp(style_params, z):
    Dc = z.shape[1]
    W = jnp.stack([lp["w"].T for lp in style_params]).astype(jnp.float32)
    b = jnp.stack([lp["b"].reshape(1, -1) for lp in style_params]).astype(jnp.float32)
    M = z.shape[0]
    Mp = _round_up(max(M, 8), 8)
    zp = jnp.pad(z.astype(jnp.float32), ((0, Mp - M), (0, 0)))
    out = pl.pallas_call(
        _style_mlp_kernel,
        out_shape=jax.ShapeDtypeStruct((Mp, Dc), jnp.float32),
    )(zp, W, b)
    return out[:M]


def adain_affine(style_code, adain_list):
    """Batch every AdaIN style-linear for one style into a single matmul."""
    Wcat = jnp.concatenate([ap["w"] for ap in adain_list], axis=0)   # [sum 2C, D]
    bcat = jnp.concatenate([ap["b"] for ap in adain_list], axis=0)
    gb = matmul_bias_act(style_code, Wcat.T, bcat, act=None,
                         out_dtype=jnp.float32)                      # [B, sum 2C]
    outs, off = [], 0
    for ap in adain_list:
        C = ap["w"].shape[0] // 2
        gamma = gb[:, off:off + C].reshape(-1, 1, C)
        beta = gb[:, off + C:off + 2 * C].reshape(-1, 1, C)
        outs.append((gamma, beta))
        off += 2 * C
    return outs


# --------------------------------------------------------------------------
# Interpolation / affine_grid / grid_sample (plain-JAX glue, bf16)
# --------------------------------------------------------------------------
def _lin_idx(out_size, in_size):
    i = jnp.arange(out_size, dtype=jnp.float32)
    src = (i + 0.5) * (in_size / out_size) - 0.5              # align_corners=False
    src = jnp.maximum(src, 0.0)
    i0 = jnp.minimum(jnp.floor(src), in_size - 1).astype(jnp.int32)
    i1 = jnp.minimum(i0 + 1, in_size - 1)
    w1 = jnp.clip(src - i0.astype(jnp.float32), 0.0, 1.0)
    return i0, i1, 1.0 - w1, w1


def upsample2x(x, nd):
    """F.interpolate(scale_factor=2, 'trilinear'/'bilinear', ac=False), NDHWC."""
    # TODO(synk): single-pass Pallas upsample (or fold into conv halo reads).
    for ax in range(1, 1 + nd):
        n = x.shape[ax]
        i0, i1, w0, w1 = _lin_idx(2 * n, n)
        x0 = jnp.take(x, i0, axis=ax)
        x1 = jnp.take(x, i1, axis=ax)
        shp = [1] * x.ndim
        shp[ax] = 2 * n
        x = x0 * w0.reshape(shp).astype(x.dtype) + x1 * w1.reshape(shp).astype(x.dtype)
    return x


def affine_grid_3d(theta, size):
    """F.affine_grid(theta, size), align_corners=False; last dim (x,y,z)."""
    B, C, D, H, W = size

    def coords(n):
        return (2.0 * jnp.arange(n, dtype=jnp.float32) + 1.0) / n - 1.0

    zz, yy, xx = jnp.meshgrid(coords(D), coords(H), coords(W), indexing="ij")
    base = jnp.stack([xx, yy, zz, jnp.ones_like(xx)], axis=-1)    # [D,H,W,4]
    return jnp.einsum("dhwk,bik->bdhwi", base, theta)             # [B,D,H,W,3]


def grid_sample_3d_nearest(x, grid):
    """F.grid_sample 3-D, mode='nearest', zeros padding, ac=False; x NDHWC."""
    B, D, H, W, C = x.shape
    gx, gy, gz = grid[..., 0], grid[..., 1], grid[..., 2]
    ix = ((gx + 1.0) * W - 1.0) * 0.5
    iy = ((gy + 1.0) * H - 1.0) * 0.5
    iz = ((gz + 1.0) * D - 1.0) * 0.5
    xi = jnp.round(ix).astype(jnp.int32)
    yi = jnp.round(iy).astype(jnp.int32)
    zi = jnp.round(iz).astype(jnp.int32)
    valid = ((xi >= 0) & (xi < W) & (yi >= 0) & (yi < H) & (zi >= 0) & (zi < D))
    xc = jnp.clip(xi, 0, W - 1)
    yc = jnp.clip(yi, 0, H - 1)
    zc = jnp.clip(zi, 0, D - 1)
    lin = (zc * H + yc) * W + xc                                  # [B,D,H,W]
    xf = x.reshape(B, D * H * W, C)
    gathered = jax.vmap(lambda xb, ib: jnp.take(xb, ib, axis=0))(xf, lin.reshape(B, -1))
    out = gathered.reshape(B, D, H, W, C)
    return out * valid[..., None].astype(x.dtype)


# --------------------------------------------------------------------------
# Parameters (equal-lr scaling folded into the init, like EqualConv/EqualLinear)
# --------------------------------------------------------------------------
def init_params(code_dim=128, n_mlp=8, div=1, seed=0):
    """div > 1 scales all channel widths down (structure unchanged)."""
    keys = iter(jax.random.split(jax.random.PRNGKey(seed), 512))
    nk = lambda: next(keys)
    c = lambda n: max(n // div, 2)

    def linear(in_dim, out_dim):
        return {"w": jax.random.normal(nk(), (out_dim, in_dim), jnp.float32)
                     * math.sqrt(2.0 / in_dim),
                "b": jnp.zeros((out_dim,), jnp.float32)}

    def adain(channels, style_dim):
        return {"w": jax.random.normal(nk(), (2 * channels, style_dim),
                                       jnp.float32) * math.sqrt(2.0 / style_dim),
                "b": jnp.concatenate([jnp.ones((channels,), jnp.float32),
                                      jnp.zeros((channels,), jnp.float32)])}

    def conv(cin, cout, k, nd):
        fan_in = cin * k ** nd
        w = jax.random.normal(nk(), (cout, cin) + (k,) * nd, jnp.float32) \
            * math.sqrt(2.0 / fan_in)
        return w, jnp.zeros((cout,), jnp.float32)

    def styled(cin, cout, nd, initial=False):
        blk = {}
        if initial:
            blk["const"] = jax.random.normal(nk(), (1,) + (4,) * nd + (cout,),
                                             jnp.float32)
        else:
            blk["conv1_w"], blk["conv1_b"] = conv(cin, cout, 3, nd)
        blk["adain1"] = adain(cout, code_dim)
        blk["conv2_w"], blk["conv2_b"] = conv(cout, cout, 3, nd)
        blk["adain2"] = adain(cout, code_dim)
        return blk

    def plain3(cin, cout):
        blk = {}
        blk["conv1_w"], blk["conv1_b"] = conv(cin, cout, 3, 3)
        blk["conv2_w"], blk["conv2_b"] = conv(cout, cout, 3, 3)
        return blk

    gen = {
        "prog1": [styled(c(512), c(512), 3, initial=True),
                  styled(c(512), c(256), 3),
                  styled(c(256), c(128), 3)],
        "prog2": [plain3(c(128), c(64)), plain3(c(64), c(64))],
        "scb1": styled(c(512), c(256), 2),
        "scb2": styled(c(256), c(64), 2),
        "scb3": styled(c(64), c(32), 2),
    }
    gen["proj_w"], gen["proj_b"] = conv(c(64) * 16, c(512), 1, 2)
    gen["to_rgb_w"], gen["to_rgb_b"] = conv(c(32), 3, 1, 2)

    style = [linear(code_dim, code_dim) for _ in range(n_mlp)]
    return {"gen": gen, "style": style}


# --------------------------------------------------------------------------
# Model forward (channels-last internally, NCHW result)
# --------------------------------------------------------------------------
def vpas_generator(p, styles, rots, batch_size):
    s0, s1 = styles[0], styles[1]

    blocks3 = p["prog1"]
    blocks2 = [p["scb1"], p["scb2"], p["scb3"]]
    ad0 = adain_affine(s0, [blk[k] for blk in blocks3 for k in ("adain1", "adain2")])
    ad1 = adain_affine(s1, [blk[k] for blk in blocks2 for k in ("adain1", "adain2")])

    # progression1 (3-D styled blocks, AdaIN); block 0 starts from a constant
    b0 = blocks3[0]
    out = jnp.broadcast_to(b0["const"].astype(DTYPE),
                           (batch_size,) + b0["const"].shape[1:])
    out = adain_lrelu(out, *ad0[0])
    out = equal_conv(out, b0["conv2_w"], b0["conv2_b"], pad=1)
    out = adain_lrelu(out, *ad0[1])
    ai = 2
    for blk in blocks3[1:]:
        out = upsample2x(out, 3)                              # trilinear x2
        out = equal_conv(out, blk["conv1_w"], blk["conv1_b"], pad=1)
        out = adain_lrelu(out, *ad0[ai]); ai += 1
        out = equal_conv(out, blk["conv2_w"], blk["conv2_b"], pad=1)
        out = adain_lrelu(out, *ad0[ai]); ai += 1             # -> [B,16,16,16,C]

    # viewpoint transform: affine_grid + nearest grid_sample (JAX gather)
    flow = affine_grid_3d(rots, (batch_size, out.shape[-1], 16, 16, 16))
    out = grid_sample_3d_nearest(out, flow)

    # progression2 (3-D, no AdaIN)
    for blk in p["prog2"]:
        out = equal_conv(out, blk["conv1_w"], blk["conv1_b"], pad=1, act="lrelu")
        out = equal_conv(out, blk["conv2_w"], blk["conv2_b"], pad=1, act="lrelu")

    # projection unit: collapse depth into channels, 1x1 conv + LeakyReLU
    B, D, H, W, C = out.shape
    out = jnp.transpose(out, (0, 2, 3, 4, 1)).reshape(B, H, W, C * D)
    out = equal_conv(out, p["proj_w"], p["proj_b"], act="lrelu")

    # 2-D styled blocks, bilinear 2x upsample before each
    ai = 0
    for blk in blocks2:
        out = upsample2x(out, 2)
        out = equal_conv(out, blk["conv1_w"], blk["conv1_b"], pad=1)
        out = adain_lrelu(out, *ad1[ai]); ai += 1
        out = equal_conv(out, blk["conv2_w"], blk["conv2_b"], pad=1)
        out = adain_lrelu(out, *ad1[ai]); ai += 1

    out = equal_conv(out, p["to_rgb_w"], p["to_rgb_b"], act=None)  # [B,128,128,3]
    return jnp.transpose(out, (0, 3, 1, 2)).astype(jnp.float32)    # NCHW


def vpaware_synthesizer(params, inputs, rots):
    if not isinstance(inputs, (list, tuple)):
        inputs = [inputs]
    styles = [style_mlp(params["style"], z) for z in inputs]
    if len(styles) == 1:
        styles = styles * 2
    return vpas_generator(params["gen"], styles, rots,
                          batch_size=inputs[0].shape[0])


# --------------------------------------------------------------------------
if __name__ == "__main__":
    B = 2
    code_dim = 128
    # Width-reduced config (channels /16, structure identical) so the full
    # forward pass finishes quickly in the sandbox (full width: div=1).
    params = init_params(code_dim=code_dim, n_mlp=8, div=16, seed=0)

    key = jax.random.PRNGKey(0)
    k1, k2, k3 = jax.random.split(key, 3)
    z1 = jax.random.normal(k1, (B, code_dim), jnp.float32)
    z2 = jax.random.normal(k2, (B, code_dim), jnp.float32)

    # rots: [B, 3, 4] affine matrices (rotation about the vertical axis)
    angles = jax.random.uniform(k3, (B,), minval=-0.5, maxval=0.5)
    c, s = jnp.cos(angles), jnp.sin(angles)
    zero, one = jnp.zeros_like(c), jnp.ones_like(c)
    rot = jnp.stack([jnp.stack([c, zero, s], -1),
                     jnp.stack([zero, one, zero], -1),
                     jnp.stack([-s, zero, c], -1)], axis=1)       # [B,3,3]
    rots = jnp.concatenate([rot, jnp.zeros((B, 3, 1), jnp.float32)], axis=-1)

    out = vpaware_synthesizer(params, [z1, z2], rots)
    out = jax.block_until_ready(out)
    assert out.shape == (B, 3, 128, 128), out.shape
    assert bool(jnp.all(jnp.isfinite(out)))
    print("KERNEL_OK")
</pallas_src>

<mosaic_0001>
module attributes {stable_mosaic.version = 11 : i64} {
  func.func @_style_mlp_kernel(%arg0: memref<8x128xf32, #tpu.memory_space<vmem>>, %arg1: memref<8x128x128xf32, #tpu.memory_space<vmem>>, %arg2: memref<8x1x128xf32, #tpu.memory_space<vmem>>, %arg3: memref<8x128xf32, #tpu.memory_space<vmem>>) attributes {dimension_semantics = [], scalar_prefetch = 0 : i64, scratch_operands = 0 : i64, tpu.core_type = #tpu.core_type<tc>} {
    %c0 = arith.constant 0 : index
    %c0_0 = arith.constant 0 : index
    %0 = vector.load %arg0[%c0, %c0_0] : memref<8x128xf32, #tpu.memory_space<vmem>>, vector<8x128xf32>
    %1 = arith.mulf %0, %0 : vector<8x128xf32>
    %cst = arith.constant dense<0.000000e+00> : vector<8xf32>
    %2 = vector.multi_reduction <add>, %1, %cst [1] : vector<8x128xf32> to vector<8xf32>
    %3 = vector.shape_cast %2 : vector<8xf32> to vector<8x1xf32>
    %cst_1 = arith.constant 1.280000e+02 : f32
    %4 = vector.broadcast %cst_1 : f32 to vector<8x1xf32>
    %5 = arith.divf %3, %4 : vector<8x1xf32>
    %cst_2 = arith.constant 9.99999993E-9 : f32
    %6 = vector.broadcast %cst_2 : f32 to vector<8x1xf32>
    %7 = arith.addf %5, %6 : vector<8x1xf32>
    %8 = math.rsqrt %7 : vector<8x1xf32>
    %9 = vector.broadcast %8 : vector<8x1xf32> to vector<8x128xf32>
    %10 = arith.mulf %0, %9 : vector<8x128xf32>
    %c0_3 = arith.constant 0 : index
    %c0_4 = arith.constant 0 : index
    %c0_5 = arith.constant 0 : index
    %11 = vector.load %arg1[%c0_3, %c0_4, %c0_5] : memref<8x128x128xf32, #tpu.memory_space<vmem>>, vector<1x128x128xf32>
    %12 = vector.shape_cast %11 : vector<1x128x128xf32> to vector<128x128xf32>
    %cst_6 = arith.constant dense<0.000000e+00> : vector<8x128xf32>
    %13 = tpu.matmul %10, %12, %cst_6 {dimension_numbers = #tpu.dot_dimension_numbers<[1], [0], [0], [1], [0, 0, 1, 1], [], []>} : vector<8x128xf32>, vector<128x128xf32>, vector<8x128xf32> -> vector<8x128xf32>
    %c0_7 = arith.constant 0 : index
    %c0_8 = arith.constant 0 : index
    %c0_9 = arith.constant 0 : index
    %14 = vector.load %arg2[%c0_7, %c0_8, %c0_9] : memref<8x1x128xf32, #tpu.memory_space<vmem>>, vector<1x1x128xf32>
    %15 = vector.shape_cast %14 : vector<1x1x128xf32> to vector<1x128xf32>
    %16 = vector.broadcast %15 : vector<1x128xf32> to vector<8x128xf32>
    %17 = arith.addf %13, %16 : vector<8x128xf32>
    %cst_10 = arith.constant 0.000000e+00 : f32
    %18 = vector.broadcast %cst_10 : f32 to vector<8x128xf32>
    %19 = arith.cmpf oge, %17, %18 : vector<8x128xf32>
    %cst_11 = arith.constant 2.000000e-01 : f32
    %20 = vector.broadcast %cst_11 : f32 to vector<8x128xf32>
    %21 = arith.mulf %20, %17 : vector<8x128xf32>
    %22 = arith.select %19, %17, %21 : vector<8x128xi1>, vector<8x128xf32>
    %c1 = arith.constant 1 : index
    %c0_12 = arith.constant 0 : index
    %c0_13 = arith.constant 0 : index
    %23 = vector.load %arg1[%c1, %c0_12, %c0_13] : memref<8x128x128xf32, #tpu.memory_space<vmem>>, vector<1x128x128xf32>
    %24 = vector.shape_cast %23 : vector<1x128x128xf32> to vector<128x128xf32>
    %cst_14 = arith.constant dense<0.000000e+00> : vector<8x128xf32>
    %25 = tpu.matmul %22, %24, %cst_14 {dimension_numbers = #tpu.dot_dimension_numbers<[1], [0], [0], [1], [0, 0, 1, 1], [], []>} : vector<8x128xf32>, vector<128x128xf32>, vector<8x128xf32> -> vector<8x128xf32>
    %c1_15 = arith.constant 1 : index
    %c0_16 = arith.constant 0 : index
    %c0_17 = arith.constant 0 : index
    %26 = vector.load %arg2[%c1_15, %c0_16, %c0_17] : memref<8x1x128xf32, #tpu.memory_space<vmem>>, vector<1x1x128xf32>
    %27 = vector.shape_cast %26 : vector<1x1x128xf32> to vector<1x128xf32>
    %28 = vector.broadcast %27 : vector<1x128xf32> to vector<8x128xf32>
    %29 = arith.addf %25, %28 : vector<8x128xf32>
    %cst_18 = arith.constant 0.000000e+00 : f32
    %30 = vector.broadcast %cst_18 : f32 to vector<8x128xf32>
    %31 = arith.cmpf oge, %29, %30 : vector<8x128xf32>
    %cst_19 = arith.constant 2.000000e-01 : f32
    %32 = vector.broadcast %cst_19 : f32 to vector<8x128xf32>
    %33 = arith.mulf %32, %29 : vector<8x128xf32>
    %34 = arith.select %31, %29, %33 : vector<8x128xi1>, vector<8x128xf32>
    %c2 = arith.constant 2 : index
    %c0_20 = arith.constant 0 : index
    %c0_21 = arith.constant 0 : index
    %35 = vector.load %arg1[%c2, %c0_20, %c0_21] : memref<8x128x128xf32, #tpu.memory_space<vmem>>, vector<1x128x128xf32>
    %36 = vector.shape_cast %35 : vector<1x128x128xf32> to vector<128x128xf32>
    %cst_22 = arith.constant dense<0.000000e+00> : vector<8x128xf32>
    %37 = tpu.matmul %34, %36, %cst_22 {dimension_numbers = #tpu.dot_dimension_numbers<[1], [0], [0], [1], [0, 0, 1, 1], [], []>} : vector<8x128xf32>, vector<128x128xf32>, vector<8x128xf32> -> vector<8x128xf32>
    %c2_23 = arith.constant 2 : index
    %c0_24 = arith.constant 0 : index
    %c0_25 = arith.constant 0 : index
    %38 = vector.load %arg2[%c2_23, %c0_24, %c0_25] : memref<8x1x128xf32, #tpu.memory_space<vmem>>, vector<1x1x128xf32>
    %39 = vector.shape_cast %38 : vector<1x1x128xf32> to vector<1x128xf32>
    %40 = vector.broadcast %39 : vector<1x128xf32> to vector<8x128xf32>
    %41 = arith.addf %37, %40 : vector<8x128xf32>
    %cst_26 = arith.constant 0.000000e+00 : f32
    %42 = vector.broadcast %cst_26 : f32 to vector<8x128xf32>
    %43 = arith.cmpf oge, %41, %42 : vector<8x128xf32>
    %cst_27 = arith.constant 2.000000e-01 : f32
    %44 = vector.broadcast %cst_27 : f32 to vector<8x128xf32>
    %45 = arith.mulf %44, %41 : vector<8x128xf32>
    %46 = arith.select %43, %41, %45 : vector<8x128xi1>, vector<8x128xf32>
    %c3 = arith.constant 3 : index
    %c0_28 = arith.constant 0 : index
    %c0_29 = arith.constant 0 : index
    %47 = vector.load %arg1[%c3, %c0_28, %c0_29] : memref<8x128x128xf32, #tpu.memory_space<vmem>>, vector<1x128x128xf32>
    %48 = vector.shape_cast %47 : vector<1x128x128xf32> to vector<128x128xf32>
    %cst_30 = arith.constant dense<0.000000e+00> : vector<8x128xf32>
    %49 = tpu.matmul %46, %48, %cst_30 {dimension_numbers = #tpu.dot_dimension_numbers<[1], [0], [0], [1], [0, 0, 1, 1], [], []>} : vector<8x128xf32>, vector<128x128xf32>, vector<8x128xf32> -> vector<8x128xf32>
    %c3_31 = arith.constant 3 : index
    %c0_32 = arith.constant 0 : index
    %c0_33 = arith.constant 0 : index
    %50 = vector.load %arg2[%c3_31, %c0_32, %c0_33] : memref<8x1x128xf32, #tpu.memory_space<vmem>>, vector<1x1x128xf32>
    %51 = vector.shape_cast %50 : vector<1x1x128xf32> to vector<1x128xf32>
    %52 = vector.broadcast %51 : vector<1x128xf32> to vector<8x128xf32>
    %53 = arith.addf %49, %52 : vector<8x128xf32>
    %cst_34 = arith.constant 0.000000e+00 : f32
    %54 = vector.broadcast %cst_34 : f32 to vector<8x128xf32>
    %55 = arith.cmpf oge, %53, %54 : vector<8x128xf32>
    %cst_35 = arith.constant 2.000000e-01 : f32
    %56 = vector.broadcast %cst_35 : f32 to vector<8x128xf32>
    %57 = arith.mulf %56, %53 : vector<8x128xf32>
    %58 = arith.select %55, %53, %57 : vector<8x128xi1>, vector<8x128xf32>
    %c4 = arith.constant 4 : index
    %c0_36 = arith.constant 0 : index
    %c0_37 = arith.constant 0 : index
    %59 = vector.load %arg1[%c4, %c0_36, %c0_37] : memref<8x128x128xf32, #tpu.memory_space<vmem>>, vector<1x128x128xf32>
    %60 = vector.shape_cast %59 : vector<1x128x128xf32> to vector<128x128xf32>
    %cst_38 = arith.constant dense<0.000000e+00> : vector<8x128xf32>
    %61 = tpu.matmul %58, %60, %cst_38 {dimension_numbers = #tpu.dot_dimension_numbers<[1], [0], [0], [1], [0, 0, 1, 1], [], []>} : vector<8x128xf32>, vector<128x128xf32>, vector<8x128xf32> -> vector<8x128xf32>
    %c4_39 = arith.constant 4 : index
    %c0_40 = arith.constant 0 : index
    %c0_41 = arith.constant 0 : index
    %62 = vector.load %arg2[%c4_39, %c0_40, %c0_41] : memref<8x1x128xf32, #tpu.memory_space<vmem>>, vector<1x1x128xf32>
    %63 = vector.shape_cast %62 : vector<1x1x128xf32> to vector<1x128xf32>
    %64 = vector.broadcast %63 : vector<1x128xf32> to vector<8x128xf32>
    %65 = arith.addf %61, %64 : vector<8x128xf32>
    %cst_42 = arith.constant 0.000000e+00 : f32
    %66 = vector.broadcast %cst_42 : f32 to vector<8x128xf32>
    %67 = arith.cmpf oge, %65, %66 : vector<8x128xf32>
    %cst_43 = arith.constant 2.000000e-01 : f32
    %68 = vector.broadcast %cst_43 : f32 to vector<8x128xf32>
    %69 = arith.mulf %68, %65 : vector<8x128xf32>
    %70 = arith.select %67, %65, %69 : vector<8x128xi1>, vector<8x128xf32>
    %c5 = arith.constant 5 : index
    %c0_44 = arith.constant 0 : index
    %c0_45 = arith.constant 0 : index
    %71 = vector.load %arg1[%c5, %c0_44, %c0_45] : memref<8x128x128xf32, #tpu.memory_space<vmem>>, vector<1x128x128xf32>
    %72 = vector.shape_cast %71 : vector<1x128x128xf32> to vector<128x128xf32>
    %cst_46 = arith.constant dense<0.000000e+00> : vector<8x128xf32>
    %73 = tpu.matmul %70, %72, %cst_46 {dimension_numbers = #tpu.dot_dimension_numbers<[1], [0], [0], [1], [0, 0, 1, 1], [], []>} : vector<8x128xf32>, vector<128x128xf32>, vector<8x128xf32> -> vector<8x128xf32>
    %c5_47 = arith.constant 5 : index
    %c0_48 = arith.constant 0 : index
    %c0_49 = arith.constant 0 : index
    %74 = vector.load %arg2[%c5_47, %c0_48, %c0_49] : memref<8x1x128xf32, #tpu.memory_space<vmem>>, vector<1x1x128xf32>
    %75 = vector.shape_cast %74 : vector<1x1x128xf32> to vector<1x128xf32>
    %76 = vector.broadcast %75 : vector<1x128xf32> to vector<8x128xf32>
    %77 = arith.addf %73, %76 : vector<8x128xf32>
    %cst_50 = arith.constant 0.000000e+00 : f32
    %78 = vector.broadcast %cst_50 : f32 to vector<8x128xf32>
    %79 = arith.cmpf oge, %77, %78 : vector<8x128xf32>
    %cst_51 = arith.constant 2.000000e-01 : f32
    %80 = vector.broadcast %cst_51 : f32 to vector<8x128xf32>
    %81 = arith.mulf %80, %77 : vector<8x128xf32>
    %82 = arith.select %79, %77, %81 : vector<8x128xi1>, vector<8x128xf32>
    %c6 = arith.constant 6 : index
    %c0_52 = arith.constant 0 : index
    %c0_53 = arith.constant 0 : index
    %83 = vector.load %arg1[%c6, %c0_52, %c0_53] : memref<8x128x128xf32, #tpu.memory_space<vmem>>, vector<1x128x128xf32>
    %84 = vector.shape_cast %83 : vector<1x128x128xf32> to vector<128x128xf32>
    %cst_54 = arith.constant dense<0.000000e+00> : vector<8x128xf32>
    %85 = tpu.matmul %82, %84, %cst_54 {dimension_numbers = #tpu.dot_dimension_numbers<[1], [0], [0], [1], [0, 0, 1, 1], [], []>} : vector<8x128xf32>, vector<128x128xf32>, vector<8x128xf32> -> vector<8x128xf32>
    %c6_55 = arith.constant 6 : index
    %c0_56 = arith.constant 0 : index
    %c0_57 = arith.constant 0 : index
    %86 = vector.load %arg2[%c6_55, %c0_56, %c0_57] : memref<8x1x128xf32, #tpu.memory_space<vmem>>, vector<1x1x128xf32>
    %87 = vector.shape_cast %86 : vector<1x1x128xf32> to vector<1x128xf32>
    %88 = vector.broadcast %87 : vector<1x128xf32> to vector<8x128xf32>
    %89 = arith.addf %85, %88 : vector<8x128xf32>
    %cst_58 = arith.constant 0.000000e+00 : f32
    %90 = vector.broadcast %cst_58 : f32 to vector<8x128xf32>
    %91 = arith.cmpf oge, %89, %90 : vector<8x128xf32>
    %cst_59 = arith.constant 2.000000e-01 : f32
    %92 = vector.broadcast %cst_59 : f32 to vector<8x128xf32>
    %93 = arith.mulf %92, %89 : vector<8x128xf32>
    %94 = arith.select %91, %89, %93 : vector<8x128xi1>, vector<8x128xf32>
    %c7 = arith.constant 7 : index
    %c0_60 = arith.constant 0 : index
    %c0_61 = arith.constant 0 : index
    %95 = vector.load %arg1[%c7, %c0_60, %c0_61] : memref<8x128x128xf32, #tpu.memory_space<vmem>>, vector<1x128x128xf32>
    %96 = vector.shape_cast %95 : vector<1x128x128xf32> to vector<128x128xf32>
    %cst_62 = arith.constant dense<0.000000e+00> : vector<8x128xf32>
    %97 = tpu.matmul %94, %96, %cst_62 {dimension_numbers = #tpu.dot_dimension_numbers<[1], [0], [0], [1], [0, 0, 1, 1], [], []>} : vector<8x128xf32>, vector<128x128xf32>, vector<8x128xf32> -> vector<8x128xf32>
    %c7_63 = arith.constant 7 : index
    %c0_64 = arith.constant 0 : index
    %c0_65 = arith.constant 0 : index
    %98 = vector.load %arg2[%c7_63, %c0_64, %c0_65] : memref<8x1x128xf32, #tpu.memory_space<vmem>>, vector<1x1x128xf32>
    %99 = vector.shape_cast %98 : vector<1x1x128xf32> to vector<1x128xf32>
    %100 = vector.broadcast %99 : vector<1x128xf32> to vector<8x128xf32>
    %101 = arith.addf %97, %100 : vector<8x128xf32>
    %cst_66 = arith.constant 0.000000e+00 : f32
    %102 = vector.broadcast %cst_66 : f32 to vector<8x128xf32>
    %103 = arith.cmpf oge, %101, %102 : vector<8x128xf32>
    %cst_67 = arith.constant 2.000000e-01 : f32
    %104 = vector.broadcast %cst_67 : f32 to vector<8x128xf32>
    %105 = arith.mulf %104, %101 : vector<8x128xf32>
    %106 = arith.select %103, %101, %105 : vector<8x128xi1>, vector<8x128xf32>
    %c0_68 = arith.constant 0 : index
    %c0_69 = arith.constant 0 : index
    %107 = vector.load %arg3[%c0_68, %c0_69] : memref<8x128xf32, #tpu.memory_space<vmem>>, vector<8x128xf32>
    tpu.vector_store %arg3[%c0_68, %c0_69], %106 {strides = array<i32>} : memref<8x128xf32, #tpu.memory_space<vmem>>, vector<8x128xf32>,
    return
  }
}

</mosaic_0001>

<llo_original>
// kernel: tpu_custom_call.1
$region0: #{tpu_custom_call.1}
  #allocation0 [shape = 'u32[]', space=smem, size = 0x4, offset = 0x4, fixed_abs, tag = 'smem constant byte address 0x4 - core index']
  #allocation1 [shape = 'u32[144,128]{1,0:T(1,128)}', space=vmem, size = 0x12000, scoped, tag = 'internal scratch']
  %s0 = inlined_call_operand.hbm [shape: f32[8,128], index: 0, kind: input, shape index: {}]
  %s1 = inlined_call_operand.hbm [shape: f32[8,128,128], index: 1, kind: input, shape index: {}]
  %s2 = inlined_call_operand.hbm [shape: f32[8,1,128], index: 2, kind: input, shape index: {}]
  %s3 = inlined_call_operand.hbm [shape: f32[8,128], index: 3, kind: output, shape index: {}]
  %s4 = sld [smem:[#allocation0]]
  $region34: #{tpu_custom_call.1} parent=0
    _
  %s6 = ssub.s32 1, %s4
  %s7 = scalar_select 0, %s6, %s4
  $region1: #{tpu_custom_call.1} parent=0
    #allocation2 [shape = 'u8[4096]{0}', space=vmem, size = 0x1000, scoped, tag = 'input window, operand 0, single buffered']
    #allocation3 [shape = 's32[1]{0}', space=sflag, size = 0x4, scoped, tag = 'scoped memory for tpu_custom_call.1']
    #allocation4 [shape = 's32[1]{0}', space=sflag, size = 0x4, scoped, tag = 'scoped memory for tpu_custom_call.1']
    #allocation5 [shape = 'u8[524288]{0}', space=vmem, size = 0x80000, scoped, tag = 'input window, operand 1, single buffered']
    #allocation6 [shape = 's32[1]{0}', space=sflag, size = 0x4, scoped, tag = 'scoped memory for tpu_custom_call.1']
    #allocation7 [shape = 'u8[4096]{0}', space=vmem, size = 0x1000, scoped, tag = 'input window, operand 2, single buffered']
    #allocation8 [shape = 'u8[4096]{0}', space=vmem, size = 0x1000, scoped, tag = 'output window, operand 0, single buffered']
    %8 = vsyncpa [#allocation3], 0
    %9 = vsyncpa [#allocation6], 0
    %10 = vsyncpa [#allocation4], 0
    // Predicated region
    $region2: #{tpu_custom_call.1} parent=1 // pred_check
      _
    $region3: #{tpu_custom_call.1} parent=1 // pred_check_branch
      %12 = sbr.rel (0) target = $region5
    $region4: #{tpu_custom_call.1} parent=1 // pred_region
      %s14 = ssub.s32 128, 128
      %15 = vsyncadd [#allocation3], %s14
      %s17 = sshll.u32 [#allocation2], 4
      %s18 = int_to_ptr.vmem [resolvable:$true] %s17
      %20 = dma.hbm_to_vmem [thread:$0]  %s0, 128, %s18, [#allocation3]
    $region5: #{tpu_custom_call.1} parent=1 // pred_fallthru
      _
    // Predicated region
    $region6: #{tpu_custom_call.1} parent=1 // pred_check
      _
    $region7: #{tpu_custom_call.1} parent=1 // pred_check_branch
      %22 = sbr.rel (0) target = $region9
    $region8: #{tpu_custom_call.1} parent=1 // pred_region
      %s24 = ssub.s32 16384, 16384
      %25 = vsyncadd [#allocation6], %s24
      %s26 = sshll.u32 [#allocation5], 4
      %s27 = int_to_ptr.vmem [resolvable:$true] %s26
      %32 = dma.hbm_to_vmem [thread:$0]  %s1, 16384, %s27, [#allocation6], 128, 128, 8
    $region9: #{tpu_custom_call.1} parent=1 // pred_fallthru
      _
    // Predicated region
    $region10: #{tpu_custom_call.1} parent=1 // pred_check
      _
    $region11: #{tpu_custom_call.1} parent=1 // pred_check_branch
      %34 = sbr.rel (0) target = $region13
    $region12: #{tpu_custom_call.1} parent=1 // pred_region
      %s36 = ssub.s32 128, 128
      %37 = vsyncadd [#allocation6], %s36
      %s38 = sshll.u32 [#allocation7], 4
      %s39 = int_to_ptr.vmem [resolvable:$true] %s38
      %44 = dma.hbm_to_vmem [thread:$0]  %s2, 128, %s39, [#allocation6], 16, 16, 1
    $region13: #{tpu_custom_call.1} parent=1 // pred_fallthru
      _
    // Predicated region
    $region14: #{tpu_custom_call.1} parent=1 // pred_check
      _
    $region15: #{tpu_custom_call.1} parent=1 // pred_check_branch
      %46 = sbr.rel (0) target = $region17
    $region16: #{tpu_custom_call.1} parent=1 // pred_region
      %47 = dma.done [#allocation3], 128
    $region17: #{tpu_custom_call.1} parent=1 // pred_fallthru
      _
    // Predicated region
    $region18: #{tpu_custom_call.1} parent=1 // pred_check
      _
    $region19: #{tpu_custom_call.1} parent=1 // pred_check_branch
      %49 = sbr.rel (0) target = $region21
    $region20: #{tpu_custom_call.1} parent=1 // pred_region
      %50 = dma.done [#allocation6], 16384
    $region21: #{tpu_custom_call.1} parent=1 // pred_fallthru
      _
    // Predicated region
    $region22: #{tpu_custom_call.1} parent=1 // pred_check
      _
    $region23: #{tpu_custom_call.1} parent=1 // pred_check_branch
      %52 = sbr.rel (0) target = $region25
    $region24: #{tpu_custom_call.1} parent=1 // pred_region
      %53 = dma.done [#allocation6], 128
    $region25: #{tpu_custom_call.1} parent=1 // pred_fallthru
      _
    %v54 = vld [vmem:[#allocation2] sm:$0xff]
    %v55 = vmul.f32 %v54, %v54
    %56 = vadd.xlane.f32.xlu0 %v55
    %v57 = vpop.xlane.xlu0 %56
    %v58 = vrcp.pop 128.0
    %v59 = vmul.f32 %v57, %v58
    %v60 = vadd.f32 %v59, 1e-08
    %v61 = vrsqrt.pop %v60
    %v62 = vmul.f32 %v54, %v61
    %v63 = vld [vmem:[#allocation5] sm:$0xff]
    %v64 = vld [vmem:[#allocation5 + $0x8] sm:$0xff]
    %v65 = vld [vmem:[#allocation5 + $0x10] sm:$0xff]
    %v66 = vld [vmem:[#allocation5 + $0x18] sm:$0xff]
    %v67 = vld [vmem:[#allocation5 + $0x20] sm:$0xff]
    %v68 = vld [vmem:[#allocation5 + $0x28] sm:$0xff]
    %v69 = vld [vmem:[#allocation5 + $0x30] sm:$0xff]
    %v70 = vld [vmem:[#allocation5 + $0x38] sm:$0xff]
    %v71 = vld [vmem:[#allocation5 + $0x40] sm:$0xff]
    %v72 = vld [vmem:[#allocation5 + $0x48] sm:$0xff]
    %v73 = vld [vmem:[#allocation5 + $0x50] sm:$0xff]
    %v74 = vld [vmem:[#allocation5 + $0x58] sm:$0xff]
    %v75 = vld [vmem:[#allocation5 + $0x60] sm:$0xff]
    %v76 = vld [vmem:[#allocation5 + $0x68] sm:$0xff]
    %v77 = vld [vmem:[#allocation5 + $0x70] sm:$0xff]
    %v78 = vld [vmem:[#allocation5 + $0x78] sm:$0xff]
    %v79 = vld [vmem:[#allocation7] sm:$0x1]
    %v81 = vlaneseq
    %v82 = vshrl.u32 %v81, 7
    %v83 = vsub.s32 0, %v82
    %v84 = vrot.slane %v79, %v83
    %86 = vmatprep.subr.mxu0 0.0
    %87 = vmatpush1.msra.mxu0 %v78
    %88 = vmatprep.subr.mxu0 0.0
    %89 = vmatpush1.msra.mxu0 %v77
    %90 = vmatprep.subr.mxu0 0.0
    %91 = vmatpush1.msra.mxu0 %v76
    %92 = vmatprep.subr.mxu0 0.0
    %93 = vmatpush1.msra.mxu0 %v75
    %94 = vmatprep.subr.mxu0 0.0
    %95 = vmatpush1.msra.mxu0 %v74
    %96 = vmatprep.subr.mxu0 0.0
    %97 = vmatpush1.msra.mxu0 %v73
    %98 = vmatprep.subr.mxu0 0.0
    %99 = vmatpush1.msra.mxu0 %v72
    %100 = vmatprep.subr.mxu0 0.0
    %101 = vmatpush1.msra.mxu0 %v71
    %102 = vmatprep.subr.mxu0 0.0
    %103 = vmatpush1.msra.mxu0 %v70
    %104 = vmatprep.subr.mxu0 0.0
    %105 = vmatpush1.msra.mxu0 %v69
    %106 = vmatprep.subr.mxu0 0.0
    %107 = vmatpush1.msra.mxu0 %v68
    %108 = vmatprep.subr.mxu0 0.0
    %109 = vmatpush1.msra.mxu0 %v67
    %110 = vmatprep.subr.mxu0 0.0
    %111 = vmatpush1.msra.mxu0 %v66
    %112 = vmatprep.subr.mxu0 0.0
    %113 = vmatpush1.msra.mxu0 %v65
    %114 = vmatprep.subr.mxu0 0.0
    %115 = vmatpush1.msra.mxu0 %v64
    %116 = vmatprep.subr.mxu0 0.0
    %117 = vmatpush1.msra.mxu0 %v63
    %118 = vmatprep.subr.mxu0 0.0
    %119 = vmatpush2.msra.mxu0 0.0
    %120 = vmatprep.subr.mxu0 0.0
    %121 = vmatpush2.msra.mxu0 0.0
    %122 = vmatprep.subr.mxu0 0.0
    %123 = vmatpush2.msra.mxu0 0.0
    %124 = vmatprep.subr.mxu0 0.0
    %125 = vmatpush2.msra.mxu0 0.0
    %126 = vmatprep.subr.mxu0 0.0
    %127 = vmatpush2.msra.mxu0 0.0
    %128 = vmatprep.subr.mxu0 0.0
    %129 = vmatpush2.msra.mxu0 0.0
    %130 = vmatprep.subr.mxu0 0.0
    %131 = vmatpush2.msra.mxu0 0.0
    %132 = vmatprep.subr.mxu0 0.0
    %133 = vmatpush2.msra.mxu0 0.0
    %134 = vmatprep.subr.mxu0 0.0
    %135 = vmatpush2.msra.mxu0 0.0
    %136 = vmatprep.subr.mxu0 0.0
    %137 = vmatpush2.msra.mxu0 0.0
    %138 = vmatprep.subr.mxu0 0.0
    %139 = vmatpush2.msra.mxu0 0.0
    %140 = vmatprep.subr.mxu0 0.0
    %141 = vmatpush2.msra.mxu0 0.0
    %142 = vmatprep.subr.mxu0 0.0
    %143 = vmatpush2.msra.mxu0 0.0
    %144 = vmatprep.subr.mxu0 0.0
    %145 = vmatpush2.msra.mxu0 0.0
    %146 = vmatprep.subr.mxu0 0.0
    %147 = vmatpush2.msra.mxu0 0.0
    %148 = vmatprep.subr.mxu0 0.0
    %149 = vmatpush2.msra.mxu0 0.0
    %150 = vmatprep.mubr.f32.mxu0 0.0
    %151 = vmatmul.mubr.f32.gmra.mxu0 %v62
    %v152 = vpop.f32.mrf.mxu0
    %v153 = vadd.f32 %v84, %v152
    %v154 = vpop.f32.mrf.mxu0
    %155 = vdwg.mxu0
    %vm156 = vcmp.ge.f32.partialorder %v153, 0.0
    %v157 = vmul.f32 %v153, 0.2
    %v158 = vsel %vm156, %v153, %v157
    %s159 = scalar_lea.vmem [#allocation5], 128
    %v160 = vld [vmem:[%s159] sm:$0xff]
    %v161 = vld [vmem:[%s159 + $0x8] sm:$0xff]
    %v162 = vld [vmem:[%s159 + $0x10] sm:$0xff]
    %v163 = vld [vmem:[%s159 + $0x18] sm:$0xff]
    %v164 = vld [vmem:[%s159 + $0x20] sm:$0xff]
    %v165 = vld [vmem:[%s159 + $0x28] sm:$0xff]
    %v166 = vld [vmem:[%s159 + $0x30] sm:$0xff]
    %v167 = vld [vmem:[%s159 + $0x38] sm:$0xff]
    %v168 = vld [vmem:[%s159 + $0x40] sm:$0xff]
    %v169 = vld [vmem:[%s159 + $0x48] sm:$0xff]
    %v170 = vld [vmem:[%s159 + $0x50] sm:$0xff]
    %v171 = vld [vmem:[%s159 + $0x58] sm:$0xff]
    %v172 = vld [vmem:[%s159 + $0x60] sm:$0xff]
    %v173 = vld [vmem:[%s159 + $0x68] sm:$0xff]
    %v174 = vld [vmem:[%s159 + $0x70] sm:$0xff]
    %v175 = vld [vmem:[%s159 + $0x78] sm:$0xff]
    %s176 = scalar_lea.vmem [#allocation7], 1
    %v177 = vld [vmem:[%s176] sm:$0x1]
    %v179 = vlaneseq
    %v180 = vshrl.u32 %v179, 7
    %v181 = vsub.s32 0, %v180
    %v182 = vrot.slane %v177, %v181
    %184 = vmatprep.subr.mxu0 0.0
    %185 = vmatpush1.msra.mxu0 %v175
    %186 = vmatprep.subr.mxu0 0.0
    %187 = vmatpush1.msra.mxu0 %v174
    %188 = vmatprep.subr.mxu0 0.0
    %189 = vmatpush1.msra.mxu0 %v173
    %190 = vmatprep.subr.mxu0 0.0
    %191 = vmatpush1.msra.mxu0 %v172
    %192 = vmatprep.subr.mxu0 0.0
    %193 = vmatpush1.msra.mxu0 %v171
    %194 = vmatprep.subr.mxu0 0.0
    %195 = vmatpush1.msra.mxu0 %v170
    %196 = vmatprep.subr.mxu0 0.0
    %197 = vmatpush1.msra.mxu0 %v169
    %198 = vmatprep.subr.mxu0 0.0
    %199 = vmatpush1.msra.mxu0 %v168
    %200 = vmatprep.subr.mxu0 0.0
    %201 = vmatpush1.msra.mxu0 %v167
    %202 = vmatprep.subr.mxu0 0.0
    %203 = vmatpush1.msra.mxu0 %v166
    %204 = vmatprep.subr.mxu0 0.0
    %205 = vmatpush1.msra.mxu0 %v165
    %206 = vmatprep.subr.mxu0 0.0
    %207 = vmatpush1.msra.mxu0 %v164
    %208 = vmatprep.subr.mxu0 0.0
    %209 = vmatpush1.msra.mxu0 %v163
    %210 = vmatprep.subr.mxu0 0.0
    %211 = vmatpush1.msra.mxu0 %v162
    %212 = vmatprep.subr.mxu0 0.0
    %213 = vmatpush1.msra.mxu0 %v161
    %214 = vmatprep.subr.mxu0 0.0
    %215 = vmatpush1.msra.mxu0 %v160
    %216 = vmatprep.subr.mxu0 0.0
    %217 = vmatpush2.msra.mxu0 0.0
    %218 = vmatprep.subr.mxu0 0.0
    %219 = vmatpush2.msra.mxu0 0.0
    %220 = vmatprep.subr.mxu0 0.0
    %221 = vmatpush2.msra.mxu0 0.0
    %222 = vmatprep.subr.mxu0 0.0
    %223 = vmatpush2.msra.mxu0 0.0
    %224 = vmatprep.subr.mxu0 0.0
    %225 = vmatpush2.msra.mxu0 0.0
    %226 = vmatprep.subr.mxu0 0.0
    %227 = vmatpush2.msra.mxu0 0.0
    %228 = vmatprep.subr.mxu0 0.0
    %229 = vmatpush2.msra.mxu0 0.0
    %230 = vmatprep.subr.mxu0 0.0
    %231 = vmatpush2.msra.mxu0 0.0
    %232 = vmatprep.subr.mxu0 0.0
    %233 = vmatpush2.msra.mxu0 0.0
    %234 = vmatprep.subr.mxu0 0.0
    %235 = vmatpush2.msra.mxu0 0.0
    %236 = vmatprep.subr.mxu0 0.0
    %237 = vmatpush2.msra.mxu0 0.0
    %238 = vmatprep.subr.mxu0 0.0
    %239 = vmatpush2.msra.mxu0 0.0
    %240 = vmatprep.subr.mxu0 0.0
    %241 = vmatpush2.msra.mxu0 0.0
    %242 = vmatprep.subr.mxu0 0.0
    %243 = vmatpush2.msra.mxu0 0.0
    %244 = vmatprep.subr.mxu0 0.0
    %245 = vmatpush2.msra.mxu0 0.0
    %246 = vmatprep.subr.mxu0 0.0
    %247 = vmatpush2.msra.mxu0 0.0
    %248 = vmatprep.mubr.f32.mxu0 0.0
    %249 = vmatmul.mubr.f32.gmra.mxu0 %v158
    %v250 = vpop.f32.mrf.mxu0
    %v251 = vadd.f32 %v182, %v250
    %v252 = vpop.f32.mrf.mxu0
    %253 = vdwg.mxu0
    %vm254 = vcmp.ge.f32.partialorder %v251, 0.0
    %v255 = vmul.f32 %v251, 0.2
    %v256 = vsel %vm254, %v251, %v255
    %s257 = scalar_lea.vmem [#allocation5], 256
    %v258 = vld [vmem:[%s257] sm:$0xff]
    %v259 = vld [vmem:[%s257 + $0x8] sm:$0xff]
    %v260 = vld [vmem:[%s257 + $0x10] sm:$0xff]
    %v261 = vld [vmem:[%s257 + $0x18] sm:$0xff]
    %v262 = vld [vmem:[%s257 + $0x20] sm:$0xff]
    %v263 = vld [vmem:[%s257 + $0x28] sm:$0xff]
    %v264 = vld [vmem:[%s257 + $0x30] sm:$0xff]
    %v265 = vld [vmem:[%s257 + $0x38] sm:$0xff]
    %v266 = vld [vmem:[%s257 + $0x40] sm:$0xff]
    %v267 = vld [vmem:[%s257 + $0x48] sm:$0xff]
    %v268 = vld [vmem:[%s257 + $0x50] sm:$0xff]
    %v269 = vld [vmem:[%s257 + $0x58] sm:$0xff]
    %v270 = vld [vmem:[%s257 + $0x60] sm:$0xff]
    %v271 = vld [vmem:[%s257 + $0x68] sm:$0xff]
    %v272 = vld [vmem:[%s257 + $0x70] sm:$0xff]
    %v273 = vld [vmem:[%s257 + $0x78] sm:$0xff]
    %s274 = scalar_lea.vmem [#allocation7], 2
    %v275 = vld [vmem:[%s274] sm:$0x1]
    %v277 = vlaneseq
    %v278 = vshrl.u32 %v277, 7
    %v279 = vsub.s32 0, %v278
    %v280 = vrot.slane %v275, %v279
    %282 = vmatprep.subr.mxu0 0.0
    %283 = vmatpush1.msra.mxu0 %v273
    %284 = vmatprep.subr.mxu0 0.0
    %285 = vmatpush1.msra.mxu0 %v272
    %286 = vmatprep.subr.mxu0 0.0
    %287 = vmatpush1.msra.mxu0 %v271
    %288 = vmatprep.subr.mxu0 0.0
    %289 = vmatpush1.msra.mxu0 %v270
    %290 = vmatprep.subr.mxu0 0.0
    %291 = vmatpush1.msra.mxu0 %v269
    %292 = vmatprep.subr.mxu0 0.0
    %293 = vmatpush1.msra.mxu0 %v268
    %294 = vmatprep.subr.mxu0 0.0
    %295 = vmatpush1.msra.mxu0 %v267
    %296 = vmatprep.subr.mxu0 0.0
    %297 = vmatpush1.msra.mxu0 %v266
    %298 = vmatprep.subr.mxu0 0.0
    %299 = vmatpush1.msra.mxu0 %v265
    %300 = vmatprep.subr.mxu0 0.0
    %301 = vmatpush1.msra.mxu0 %v264
    %302 = vmatprep.subr.mxu0 0.0
    %303 = vmatpush1.msra.mxu0 %v263
    %304 = vmatprep.subr.mxu0 0.0
    %305 = vmatpush1.msra.mxu0 %v262
    %306 = vmatprep.subr.mxu0 0.0
    %307 = vmatpush1.msra.mxu0 %v261
    %308 = vmatprep.subr.mxu0 0.0
    %309 = vmatpush1.msra.mxu0 %v260
    %310 = vmatprep.subr.mxu0 0.0
    %311 = vmatpush1.msra.mxu0 %v259
    %312 = vmatprep.subr.mxu0 0.0
    %313 = vmatpush1.msra.mxu0 %v258
    %314 = vmatprep.subr.mxu0 0.0
    %315 = vmatpush2.msra.mxu0 0.0
    %316 = vmatprep.subr.mxu0 0.0
    %317 = vmatpush2.msra.mxu0 0.0
    %318 = vmatprep.subr.mxu0 0.0
    %319 = vmatpush2.msra.mxu0 0.0
    %320 = vmatprep.subr.mxu0 0.0
    %321 = vmatpush2.msra.mxu0 0.0
    %322 = vmatprep.subr.mxu0 0.0
    %323 = vmatpush2.msra.mxu0 0.0
    %324 = vmatprep.subr.mxu0 0.0
    %325 = vmatpush2.msra.mxu0 0.0
    %326 = vmatprep.subr.mxu0 0.0
    %327 = vmatpush2.msra.mxu0 0.0
    %328 = vmatprep.subr.mxu0 0.0
    %329 = vmatpush2.msra.mxu0 0.0
    %330 = vmatprep.subr.mxu0 0.0
    %331 = vmatpush2.msra.mxu0 0.0
    %332 = vmatprep.subr.mxu0 0.0
    %333 = vmatpush2.msra.mxu0 0.0
    %334 = vmatprep.subr.mxu0 0.0
    %335 = vmatpush2.msra.mxu0 0.0
    %336 = vmatprep.subr.mxu0 0.0
    %337 = vmatpush2.msra.mxu0 0.0
    %338 = vmatprep.subr.mxu0 0.0
    %339 = vmatpush2.msra.mxu0 0.0
    %340 = vmatprep.subr.mxu0 0.0
    %341 = vmatpush2.msra.mxu0 0.0
    %342 = vmatprep.subr.mxu0 0.0
    %343 = vmatpush2.msra.mxu0 0.0
    %344 = vmatprep.subr.mxu0 0.0
    %345 = vmatpush2.msra.mxu0 0.0
    %346 = vmatprep.mubr.f32.mxu0 0.0
    %347 = vmatmul.mubr.f32.gmra.mxu0 %v256
    %v348 = vpop.f32.mrf.mxu0
    %v349 = vadd.f32 %v280, %v348
    %v350 = vpop.f32.mrf.mxu0
    %351 = vdwg.mxu0
    %vm352 = vcmp.ge.f32.partialorder %v349, 0.0
    %v353 = vmul.f32 %v349, 0.2
    %v354 = vsel %vm352, %v349, %v353
    %s355 = scalar_lea.vmem [#allocation5], 384
    %v356 = vld [vmem:[%s355] sm:$0xff]
    %v357 = vld [vmem:[%s355 + $0x8] sm:$0xff]
    %v358 = vld [vmem:[%s355 + $0x10] sm:$0xff]
    %v359 = vld [vmem:[%s355 + $0x18] sm:$0xff]
    %v360 = vld [vmem:[%s355 + $0x20] sm:$0xff]
    %v361 = vld [vmem:[%s355 + $0x28] sm:$0xff]
    %v362 = vld [vmem:[%s355 + $0x30] sm:$0xff]
    %v363 = vld [vmem:[%s355 + $0x38] sm:$0xff]
    %v364 = vld [vmem:[%s355 + $0x40] sm:$0xff]
    %v365 = vld [vmem:[%s355 + $0x48] sm:$0xff]
    %v366 = vld [vmem:[%s355 + $0x50] sm:$0xff]
    %v367 = vld [vmem:[%s355 + $0x58] sm:$0xff]
    %v368 = vld [vmem:[%s355 + $0x60] sm:$0xff]
    %v369 = vld [vmem:[%s355 + $0x68] sm:$0xff]
    %v370 = vld [vmem:[%s355 + $0x70] sm:$0xff]
    %v371 = vld [vmem:[%s355 + $0x78] sm:$0xff]
    %s372 = scalar_lea.vmem [#allocation7], 3
    %v373 = vld [vmem:[%s372] sm:$0x1]
    %v375 = vlaneseq
    %v376 = vshrl.u32 %v375, 7
    %v377 = vsub.s32 0, %v376
    %v378 = vrot.slane %v373, %v377
    %380 = vmatprep.subr.mxu0 0.0
    %381 = vmatpush1.msra.mxu0 %v371
    %382 = vmatprep.subr.mxu0 0.0
    %383 = vmatpush1.msra.mxu0 %v370
    %384 = vmatprep.subr.mxu0 0.0
    %385 = vmatpush1.msra.mxu0 %v369
    %386 = vmatprep.subr.mxu0 0.0
    %387 = vmatpush1.msra.mxu0 %v368
    %388 = vmatprep.subr.mxu0 0.0
    %389 = vmatpush1.msra.mxu0 %v367
    %390 = vmatprep.subr.mxu0 0.0
    %391 = vmatpush1.msra.mxu0 %v366
    %392 = vmatprep.subr.mxu0 0.0
    %393 = vmatpush1.msra.mxu0 %v365
    %394 = vmatprep.subr.mxu0 0.0
    %395 = vmatpush1.msra.mxu0 %v364
    %396 = vmatprep.subr.mxu0 0.0
    %397 = vmatpush1.msra.mxu0 %v363
    %398 = vmatprep.subr.mxu0 0.0
    %399 = vmatpush1.msra.mxu0 %v362
    %400 = vmatprep.subr.mxu0 0.0
    %401 = vmatpush1.msra.mxu0 %v361
    %402 = vmatprep.subr.mxu0 0.0
    %403 = vmatpush1.msra.mxu0 %v360
    %404 = vmatprep.subr.mxu0 0.0
    %405 = vmatpush1.msra.mxu0 %v359
    %406 = vmatprep.subr.mxu0 0.0
    %407 = vmatpush1.msra.mxu0 %v358
    %408 = vmatprep.subr.mxu0 0.0
    %409 = vmatpush1.msra.mxu0 %v357
    %410 = vmatprep.subr.mxu0 0.0
    %411 = vmatpush1.msra.mxu0 %v356
    %412 = vmatprep.subr.mxu0 0.0
    %413 = vmatpush2.msra.mxu0 0.0
    %414 = vmatprep.subr.mxu0 0.0
    %415 = vmatpush2.msra.mxu0 0.0
    %416 = vmatprep.subr.mxu0 0.0
    %417 = vmatpush2.msra.mxu0 0.0
    %418 = vmatprep.subr.mxu0 0.0
    %419 = vmatpush2.msra.mxu0 0.0
    %420 = vmatprep.subr.mxu0 0.0
    %421 = vmatpush2.msra.mxu0 0.0
    %422 = vmatprep.subr.mxu0 0.0
    %423 = vmatpush2.msra.mxu0 0.0
    %424 = vmatprep.subr.mxu0 0.0
    %425 = vmatpush2.msra.mxu0 0.0
    %426 = vmatprep.subr.mxu0 0.0
    %427 = vmatpush2.msra.mxu0 0.0
    %428 = vmatprep.subr.mxu0 0.0
    %429 = vmatpush2.msra.mxu0 0.0
    %430 = vmatprep.subr.mxu0 0.0
    %431 = vmatpush2.msra.mxu0 0.0
    %432 = vmatprep.subr.mxu0 0.0
    %433 = vmatpush2.msra.mxu0 0.0
    %434 = vmatprep.subr.mxu0 0.0
    %435 = vmatpush2.msra.mxu0 0.0
    %436 = vmatprep.subr.mxu0 0.0
    %437 = vmatpush2.msra.mxu0 0.0
    %438 = vmatprep.subr.mxu0 0.0
    %439 = vmatpush2.msra.mxu0 0.0
    %440 = vmatprep.subr.mxu0 0.0
    %441 = vmatpush2.msra.mxu0 0.0
    %442 = vmatprep.subr.mxu0 0.0
    %443 = vmatpush2.msra.mxu0 0.0
    %444 = vmatprep.mubr.f32.mxu0 0.0
    %445 = vmatmul.mubr.f32.gmra.mxu0 %v354
    %v446 = vpop.f32.mrf.mxu0
    %v447 = vadd.f32 %v378, %v446
    %v448 = vpop.f32.mrf.mxu0
    %449 = vdwg.mxu0
    %vm450 = vcmp.ge.f32.partialorder %v447, 0.0
    %v451 = vmul.f32 %v447, 0.2
    %v452 = vsel %vm450, %v447, %v451
    %s453 = scalar_lea.vmem [#allocation5], 512
    %v454 = vld [vmem:[%s453] sm:$0xff]
    %v455 = vld [vmem:[%s453 + $0x8] sm:$0xff]
    %v456 = vld [vmem:[%s453 + $0x10] sm:$0xff]
    %v457 = vld [vmem:[%s453 + $0x18] sm:$0xff]
    %v458 = vld [vmem:[%s453 + $0x20] sm:$0xff]
    %v459 = vld [vmem:[%s453 + $0x28] sm:$0xff]
    %v460 = vld [vmem:[%s453 + $0x30] sm:$0xff]
    %v461 = vld [vmem:[%s453 + $0x38] sm:$0xff]
    %v462 = vld [vmem:[%s453 + $0x40] sm:$0xff]
    %v463 = vld [vmem:[%s453 + $0x48] sm:$0xff]
    %v464 = vld [vmem:[%s453 + $0x50] sm:$0xff]
    %v465 = vld [vmem:[%s453 + $0x58] sm:$0xff]
    %v466 = vld [vmem:[%s453 + $0x60] sm:$0xff]
    %v467 = vld [vmem:[%s453 + $0x68] sm:$0xff]
    %v468 = vld [vmem:[%s453 + $0x70] sm:$0xff]
    %v469 = vld [vmem:[%s453 + $0x78] sm:$0xff]
    %s470 = scalar_lea.vmem [#allocation7], 4
    %v471 = vld [vmem:[%s470] sm:$0x1]
    %v473 = vlaneseq
    %v474 = vshrl.u32 %v473, 7
    %v475 = vsub.s32 0, %v474
    %v476 = vrot.slane %v471, %v475
    %478 = vmatprep.subr.mxu0 0.0
    %479 = vmatpush1.msra.mxu0 %v469
    %480 = vmatprep.subr.mxu0 0.0
    %481 = vmatpush1.msra.mxu0 %v468
    %482 = vmatprep.subr.mxu0 0.0
    %483 = vmatpush1.msra.mxu0 %v467
    %484 = vmatprep.subr.mxu0 0.0
    %485 = vmatpush1.msra.mxu0 %v466
    %486 = vmatprep.subr.mxu0 0.0
    %487 = vmatpush1.msra.mxu0 %v465
    %488 = vmatprep.subr.mxu0 0.0
    %489 = vmatpush1.msra.mxu0 %v464
    %490 = vmatprep.subr.mxu0 0.0
    %491 = vmatpush1.msra.mxu0 %v463
    %492 = vmatprep.subr.mxu0 0.0
    %493 = vmatpush1.msra.mxu0 %v462
    %494 = vmatprep.subr.mxu0 0.0
    %495 = vmatpush1.msra.mxu0 %v461
    %496 = vmatprep.subr.mxu0 0.0
    %497 = vmatpush1.msra.mxu0 %v460
    %498 = vmatprep.subr.mxu0 0.0
    %499 = vmatpush1.msra.mxu0 %v459
    %500 = vmatprep.subr.mxu0 0.0
    %501 = vmatpush1.msra.mxu0 %v458
    %502 = vmatprep.subr.mxu0 0.0
    %503 = vmatpush1.msra.mxu0 %v457
    %504 = vmatprep.subr.mxu0 0.0
    %505 = vmatpush1.msra.mxu0 %v456
    %506 = vmatprep.subr.mxu0 0.0
    %507 = vmatpush1.msra.mxu0 %v455
    %508 = vmatprep.subr.mxu0 0.0
    %509 = vmatpush1.msra.mxu0 %v454
    %510 = vmatprep.subr.mxu0 0.0
    %511 = vmatpush2.msra.mxu0 0.0
    %512 = vmatprep.subr.mxu0 0.0
    %513 = vmatpush2.msra.mxu0 0.0
    %514 = vmatprep.subr.mxu0 0.0
    %515 = vmatpush2.msra.mxu0 0.0
    %516 = vmatprep.subr.mxu0 0.0
    %517 = vmatpush2.msra.mxu0 0.0
    %518 = vmatprep.subr.mxu0 0.0
    %519 = vmatpush2.msra.mxu0 0.0
    %520 = vmatprep.subr.mxu0 0.0
    %521 = vmatpush2.msra.mxu0 0.0
    %522 = vmatprep.subr.mxu0 0.0
    %523 = vmatpush2.msra.mxu0 0.0
    %524 = vmatprep.subr.mxu0 0.0
    %525 = vmatpush2.msra.mxu0 0.0
    %526 = vmatprep.subr.mxu0 0.0
    %527 = vmatpush2.msra.mxu0 0.0
    %528 = vmatprep.subr.mxu0 0.0
    %529 = vmatpush2.msra.mxu0 0.0
    %530 = vmatprep.subr.mxu0 0.0
    %531 = vmatpush2.msra.mxu0 0.0
    %532 = vmatprep.subr.mxu0 0.0
    %533 = vmatpush2.msra.mxu0 0.0
    %534 = vmatprep.subr.mxu0 0.0
    %535 = vmatpush2.msra.mxu0 0.0
    %536 = vmatprep.subr.mxu0 0.0
    %537 = vmatpush2.msra.mxu0 0.0
    %538 = vmatprep.subr.mxu0 0.0
    %539 = vmatpush2.msra.mxu0 0.0
    %540 = vmatprep.subr.mxu0 0.0
    %541 = vmatpush2.msra.mxu0 0.0
    %542 = vmatprep.mubr.f32.mxu0 0.0
    %543 = vmatmul.mubr.f32.gmra.mxu0 %v452
    %v544 = vpop.f32.mrf.mxu0
    %v545 = vadd.f32 %v476, %v544
    %v546 = vpop.f32.mrf.mxu0
    %547 = vdwg.mxu0
    %vm548 = vcmp.ge.f32.partialorder %v545, 0.0
    %v549 = vmul.f32 %v545, 0.2
    %v550 = vsel %vm548, %v545, %v549
    %s551 = scalar_lea.vmem [#allocation5], 640
    %v552 = vld [vmem:[%s551] sm:$0xff]
    %v553 = vld [vmem:[%s551 + $0x8] sm:$0xff]
    %v554 = vld [vmem:[%s551 + $0x10] sm:$0xff]
    %v555 = vld [vmem:[%s551 + $0x18] sm:$0xff]
    %v556 = vld [vmem:[%s551 + $0x20] sm:$0xff]
    %v557 = vld [vmem:[%s551 + $0x28] sm:$0xff]
    %v558 = vld [vmem:[%s551 + $0x30] sm:$0xff]
    %v559 = vld [vmem:[%s551 + $0x38] sm:$0xff]
    %v560 = vld [vmem:[%s551 + $0x40] sm:$0xff]
    %v561 = vld [vmem:[%s551 + $0x48] sm:$0xff]
    %v562 = vld [vmem:[%s551 + $0x50] sm:$0xff]
    %v563 = vld [vmem:[%s551 + $0x58] sm:$0xff]
    %v564 = vld [vmem:[%s551 + $0x60] sm:$0xff]
    %v565 = vld [vmem:[%s551 + $0x68] sm:$0xff]
    %v566 = vld [vmem:[%s551 + $0x70] sm:$0xff]
    %v567 = vld [vmem:[%s551 + $0x78] sm:$0xff]
    %s568 = scalar_lea.vmem [#allocation7], 5
    %v569 = vld [vmem:[%s568] sm:$0x1]
    %v571 = vlaneseq
    %v572 = vshrl.u32 %v571, 7
    %v573 = vsub.s32 0, %v572
    %v574 = vrot.slane %v569, %v573
    %576 = vmatprep.subr.mxu0 0.0
    %577 = vmatpush1.msra.mxu0 %v567
    %578 = vmatprep.subr.mxu0 0.0
    %579 = vmatpush1.msra.mxu0 %v566
    %580 = vmatprep.subr.mxu0 0.0
    %581 = vmatpush1.msra.mxu0 %v565
    %582 = vmatprep.subr.mxu0 0.0
    %583 = vmatpush1.msra.mxu0 %v564
    %584 = vmatprep.subr.mxu0 0.0
    %585 = vmatpush1.msra.mxu0 %v563
    %586 = vmatprep.subr.mxu0 0.0
    %587 = vmatpush1.msra.mxu0 %v562
    %588 = vmatprep.subr.mxu0 0.0
    %589 = vmatpush1.msra.mxu0 %v561
    %590 = vmatprep.subr.mxu0 0.0
    %591 = vmatpush1.msra.mxu0 %v560
    %592 = vmatprep.subr.mxu0 0.0
    %593 = vmatpush1.msra.mxu0 %v559
    %594 = vmatprep.subr.mxu0 0.0
    %595 = vmatpush1.msra.mxu0 %v558
    %596 = vmatprep.subr.mxu0 0.0
    %597 = vmatpush1.msra.mxu0 %v557
    %598 = vmatprep.subr.mxu0 0.0
    %599 = vmatpush1.msra.mxu0 %v556
    %600 = vmatprep.subr.mxu0 0.0
    %601 = vmatpush1.msra.mxu0 %v555
    %602 = vmatprep.subr.mxu0 0.0
    %603 = vmatpush1.msra.mxu0 %v554
    %604 = vmatprep.subr.mxu0 0.0
    %605 = vmatpush1.msra.mxu0 %v553
    %606 = vmatprep.subr.mxu0 0.0
    %607 = vmatpush1.msra.mxu0 %v552
    %608 = vmatprep.subr.mxu0 0.0
    %609 = vmatpush2.msra.mxu0 0.0
    %610 = vmatprep.subr.mxu0 0.0
    %611 = vmatpush2.msra.mxu0 0.0
    %612 = vmatprep.subr.mxu0 0.0
    %613 = vmatpush2.msra.mxu0 0.0
    %614 = vmatprep.subr.mxu0 0.0
    %615 = vmatpush2.msra.mxu0 0.0
    %616 = vmatprep.subr.mxu0 0.0
    %617 = vmatpush2.msra.mxu0 0.0
    %618 = vmatprep.subr.mxu0 0.0
    %619 = vmatpush2.msra.mxu0 0.0
    %620 = vmatprep.subr.mxu0 0.0
    %621 = vmatpush2.msra.mxu0 0.0
    %622 = vmatprep.subr.mxu0 0.0
    %623 = vmatpush2.msra.mxu0 0.0
    %624 = vmatprep.subr.mxu0 0.0
    %625 = vmatpush2.msra.mxu0 0.0
    %626 = vmatprep.subr.mxu0 0.0
    %627 = vmatpush2.msra.mxu0 0.0
    %628 = vmatprep.subr.mxu0 0.0
    %629 = vmatpush2.msra.mxu0 0.0
    %630 = vmatprep.subr.mxu0 0.0
    %631 = vmatpush2.msra.mxu0 0.0
    %632 = vmatprep.subr.mxu0 0.0
    %633 = vmatpush2.msra.mxu0 0.0
    %634 = vmatprep.subr.mxu0 0.0
    %635 = vmatpush2.msra.mxu0 0.0
    %636 = vmatprep.subr.mxu0 0.0
    %637 = vmatpush2.msra.mxu0 0.0
    %638 = vmatprep.subr.mxu0 0.0
    %639 = vmatpush2.msra.mxu0 0.0
    %640 = vmatprep.mubr.f32.mxu0 0.0
    %641 = vmatmul.mubr.f32.gmra.mxu0 %v550
    %v642 = vpop.f32.mrf.mxu0
    %v643 = vadd.f32 %v574, %v642
    %v644 = vpop.f32.mrf.mxu0
    %645 = vdwg.mxu0
    %vm646 = vcmp.ge.f32.partialorder %v643, 0.0
    %v647 = vmul.f32 %v643, 0.2
    %v648 = vsel %vm646, %v643, %v647
    %s649 = scalar_lea.vmem [#allocation5], 768
    %v650 = vld [vmem:[%s649] sm:$0xff]
    %v651 = vld [vmem:[%s649 + $0x8] sm:$0xff]
    %v652 = vld [vmem:[%s649 + $0x10] sm:$0xff]
    %v653 = vld [vmem:[%s649 + $0x18] sm:$0xff]
    %v654 = vld [vmem:[%s649 + $0x20] sm:$0xff]
    %v655 = vld [vmem:[%s649 + $0x28] sm:$0xff]
    %v656 = vld [vmem:[%s649 + $0x30] sm:$0xff]
    %v657 = vld [vmem:[%s649 + $0x38] sm:$0xff]
    %v658 = vld [vmem:[%s649 + $0x40] sm:$0xff]
    %v659 = vld [vmem:[%s649 + $0x48] sm:$0xff]
    %v660 = vld [vmem:[%s649 + $0x50] sm:$0xff]
    %v661 = vld [vmem:[%s649 + $0x58] sm:$0xff]
    %v662 = vld [vmem:[%s649 + $0x60] sm:$0xff]
    %v663 = vld [vmem:[%s649 + $0x68] sm:$0xff]
    %v664 = vld [vmem:[%s649 + $0x70] sm:$0xff]
    %v665 = vld [vmem:[%s649 + $0x78] sm:$0xff]
    %s666 = scalar_lea.vmem [#allocation7], 6
    %v667 = vld [vmem:[%s666] sm:$0x1]
    %v669 = vlaneseq
    %v670 = vshrl.u32 %v669, 7
    %v671 = vsub.s32 0, %v670
    %v672 = vrot.slane %v667, %v671
    %674 = vmatprep.subr.mxu0 0.0
    %675 = vmatpush1.msra.mxu0 %v665
    %676 = vmatprep.subr.mxu0 0.0
    %677 = vmatpush1.msra.mxu0 %v664
    %678 = vmatprep.subr.mxu0 0.0
    %679 = vmatpush1.msra.mxu0 %v663
    %680 = vmatprep.subr.mxu0 0.0
    %681 = vmatpush1.msra.mxu0 %v662
    %682 = vmatprep.subr.mxu0 0.0
    %683 = vmatpush1.msra.mxu0 %v661
    %684 = vmatprep.subr.mxu0 0.0
    %685 = vmatpush1.msra.mxu0 %v660
    %686 = vmatprep.subr.mxu0 0.0
    %687 = vmatpush1.msra.mxu0 %v659
    %688 = vmatprep.subr.mxu0 0.0
    %689 = vmatpush1.msra.mxu0 %v658
    %690 = vmatprep.subr.mxu0 0.0
    %691 = vmatpush1.msra.mxu0 %v657
    %692 = vmatprep.subr.mxu0 0.0
    %693 = vmatpush1.msra.mxu0 %v656
    %694 = vmatprep.subr.mxu0 0.0
    %695 = vmatpush1.msra.mxu0 %v655
    %696 = vmatprep.subr.mxu0 0.0
    %697 = vmatpush1.msra.mxu0 %v654
    %698 = vmatprep.subr.mxu0 0.0
    %699 = vmatpush1.msra.mxu0 %v653
    %700 = vmatprep.subr.mxu0 0.0
    %701 = vmatpush1.msra.mxu0 %v652
    %702 = vmatprep.subr.mxu0 0.0
    %703 = vmatpush1.msra.mxu0 %v651
    %704 = vmatprep.subr.mxu0 0.0
    %705 = vmatpush1.msra.mxu0 %v650
    %706 = vmatprep.subr.mxu0 0.0
    %707 = vmatpush2.msra.mxu0 0.0
    %708 = vmatprep.subr.mxu0 0.0
    %709 = vmatpush2.msra.mxu0 0.0
    %710 = vmatprep.subr.mxu0 0.0
    %711 = vmatpush2.msra.mxu0 0.0
    %712 = vmatprep.subr.mxu0 0.0
    %713 = vmatpush2.msra.mxu0 0.0
    %714 = vmatprep.subr.mxu0 0.0
    %715 = vmatpush2.msra.mxu0 0.0
    %716 = vmatprep.subr.mxu0 0.0
    %717 = vmatpush2.msra.mxu0 0.0
    %718 = vmatprep.subr.mxu0 0.0
    %719 = vmatpush2.msra.mxu0 0.0
    %720 = vmatprep.subr.mxu0 0.0
    %721 = vmatpush2.msra.mxu0 0.0
    %722 = vmatprep.subr.mxu0 0.0
    %723 = vmatpush2.msra.mxu0 0.0
    %724 = vmatprep.subr.mxu0 0.0
    %725 = vmatpush2.msra.mxu0 0.0
    %726 = vmatprep.subr.mxu0 0.0
    %727 = vmatpush2.msra.mxu0 0.0
    %728 = vmatprep.subr.mxu0 0.0
    %729 = vmatpush2.msra.mxu0 0.0
    %730 = vmatprep.subr.mxu0 0.0
    %731 = vmatpush2.msra.mxu0 0.0
    %732 = vmatprep.subr.mxu0 0.0
    %733 = vmatpush2.msra.mxu0 0.0
    %734 = vmatprep.subr.mxu0 0.0
    %735 = vmatpush2.msra.mxu0 0.0
    %736 = vmatprep.subr.mxu0 0.0
    %737 = vmatpush2.msra.mxu0 0.0
    %738 = vmatprep.mubr.f32.mxu0 0.0
    %739 = vmatmul.mubr.f32.gmra.mxu0 %v648
    %v740 = vpop.f32.mrf.mxu0
    %v741 = vadd.f32 %v672, %v740
    %v742 = vpop.f32.mrf.mxu0
    %743 = vdwg.mxu0
    %vm744 = vcmp.ge.f32.partialorder %v741, 0.0
    %v745 = vmul.f32 %v741, 0.2
    %v746 = vsel %vm744, %v741, %v745
    %s747 = scalar_lea.vmem [#allocation5], 896
    %v748 = vld [vmem:[%s747] sm:$0xff]
    %v749 = vld [vmem:[%s747 + $0x8] sm:$0xff]
    %v750 = vld [vmem:[%s747 + $0x10] sm:$0xff]
    %v751 = vld [vmem:[%s747 + $0x18] sm:$0xff]
    %v752 = vld [vmem:[%s747 + $0x20] sm:$0xff]
    %v753 = vld [vmem:[%s747 + $0x28] sm:$0xff]
    %v754 = vld [vmem:[%s747 + $0x30] sm:$0xff]
    %v755 = vld [vmem:[%s747 + $0x38] sm:$0xff]
    %v756 = vld [vmem:[%s747 + $0x40] sm:$0xff]
    %v757 = vld [vmem:[%s747 + $0x48] sm:$0xff]
    %v758 = vld [vmem:[%s747 + $0x50] sm:$0xff]
    %v759 = vld [vmem:[%s747 + $0x58] sm:$0xff]
    %v760 = vld [vmem:[%s747 + $0x60] sm:$0xff]
    %v761 = vld [vmem:[%s747 + $0x68] sm:$0xff]
    %v762 = vld [vmem:[%s747 + $0x70] sm:$0xff]
    %v763 = vld [vmem:[%s747 + $0x78] sm:$0xff]
    %s764 = scalar_lea.vmem [#allocation7], 7
    %v765 = vld [vmem:[%s764] sm:$0x1]
    %v767 = vlaneseq
    %v768 = vshrl.u32 %v767, 7
    %v769 = vsub.s32 0, %v768
    %v770 = vrot.slane %v765, %v769
    %772 = vmatprep.subr.mxu0 0.0
    %773 = vmatpush1.msra.mxu0 %v763
    %774 = vmatprep.subr.mxu0 0.0
    %775 = vmatpush1.msra.mxu0 %v762
    %776 = vmatprep.subr.mxu0 0.0
    %777 = vmatpush1.msra.mxu0 %v761
    %778 = vmatprep.subr.mxu0 0.0
    %779 = vmatpush1.msra.mxu0 %v760
    %780 = vmatprep.subr.mxu0 0.0
    %781 = vmatpush1.msra.mxu0 %v759
    %782 = vmatprep.subr.mxu0 0.0
    %783 = vmatpush1.msra.mxu0 %v758
    %784 = vmatprep.subr.mxu0 0.0
    %785 = vmatpush1.msra.mxu0 %v757
    %786 = vmatprep.subr.mxu0 0.0
    %787 = vmatpush1.msra.mxu0 %v756
    %788 = vmatprep.subr.mxu0 0.0
    %789 = vmatpush1.msra.mxu0 %v755
    %790 = vmatprep.subr.mxu0 0.0
    %791 = vmatpush1.msra.mxu0 %v754
    %792 = vmatprep.subr.mxu0 0.0
    %793 = vmatpush1.msra.mxu0 %v753
    %794 = vmatprep.subr.mxu0 0.0
    %795 = vmatpush1.msra.mxu0 %v752
    %796 = vmatprep.subr.mxu0 0.0
    %797 = vmatpush1.msra.mxu0 %v751
    %798 = vmatprep.subr.mxu0 0.0
    %799 = vmatpush1.msra.mxu0 %v750
    %800 = vmatprep.subr.mxu0 0.0
    %801 = vmatpush1.msra.mxu0 %v749
    %802 = vmatprep.subr.mxu0 0.0
    %803 = vmatpush1.msra.mxu0 %v748
    %804 = vmatprep.subr.mxu0 0.0
    %805 = vmatpush2.msra.mxu0 0.0
    %806 = vmatprep.subr.mxu0 0.0
    %807 = vmatpush2.msra.mxu0 0.0
    %808 = vmatprep.subr.mxu0 0.0
    %809 = vmatpush2.msra.mxu0 0.0
    %810 = vmatprep.subr.mxu0 0.0
    %811 = vmatpush2.msra.mxu0 0.0
    %812 = vmatprep.subr.mxu0 0.0
    %813 = vmatpush2.msra.mxu0 0.0
    %814 = vmatprep.subr.mxu0 0.0
    %815 = vmatpush2.msra.mxu0 0.0
    %816 = vmatprep.subr.mxu0 0.0
    %817 = vmatpush2.msra.mxu0 0.0
    %818 = vmatprep.subr.mxu0 0.0
    %819 = vmatpush2.msra.mxu0 0.0
    %820 = vmatprep.subr.mxu0 0.0
    %821 = vmatpush2.msra.mxu0 0.0
    %822 = vmatprep.subr.mxu0 0.0
    %823 = vmatpush2.msra.mxu0 0.0
    %824 = vmatprep.subr.mxu0 0.0
    %825 = vmatpush2.msra.mxu0 0.0
    %826 = vmatprep.subr.mxu0 0.0
    %827 = vmatpush2.msra.mxu0 0.0
    %828 = vmatprep.subr.mxu0 0.0
    %829 = vmatpush2.msra.mxu0 0.0
    %830 = vmatprep.subr.mxu0 0.0
    %831 = vmatpush2.msra.mxu0 0.0
    %832 = vmatprep.subr.mxu0 0.0
    %833 = vmatpush2.msra.mxu0 0.0
    %834 = vmatprep.subr.mxu0 0.0
    %835 = vmatpush2.msra.mxu0 0.0
    %836 = vmatprep.mubr.f32.mxu0 0.0
    %837 = vmatmul.mubr.f32.gmra.mxu0 %v746
    %v838 = vpop.f32.mrf.mxu0
    %v839 = vadd.f32 %v770, %v838
    %v840 = vpop.f32.mrf.mxu0
    %841 = vdwg.mxu0
    %vm842 = vcmp.ge.f32.partialorder %v839, 0.0
    %v843 = vmul.f32 %v839, 0.2
    %v844 = vsel %vm842, %v839, %v843
    %845 = vst [vmem:[#allocation8] sm:$0xff] %v844
    // Predicated region
    $region26: #{tpu_custom_call.1} parent=1 // pred_check
      _
    $region27: #{tpu_custom_call.1} parent=1 // pred_check_branch
      %847 = sbr.rel (0) target = $region29
    $region28: #{tpu_custom_call.1} parent=1 // pred_region
      %s849 = ssub.s32 128, 128
      %850 = vsyncadd [#allocation4], %s849
      %s852 = sshll.u32 [#allocation8], 4
      %s853 = int_to_ptr.vmem [resolvable:$true] %s852
      %855 = dma.vmem_to_hbm [thread:$0]  %s853, 128, %s3, [#allocation4]
    $region29: #{tpu_custom_call.1} parent=1 // pred_fallthru
      _
    // Predicated region
    $region30: #{tpu_custom_call.1} parent=1 // pred_check
      _
    $region31: #{tpu_custom_call.1} parent=1 // pred_check_branch
      %857 = sbr.rel (0) target = $region33
    $region32: #{tpu_custom_call.1} parent=1 // pred_region
      %858 = dma.done [#allocation4], 128
    $region33: #{tpu_custom_call.1} parent=1 // pred_fallthru
      _
    %859 = vsyncpa [#allocation3], 1
    %860 = vsyncpa [#allocation6], 1
    %861 = vsyncpa [#allocation4], 1

</llo_original>
